<compile_context>
chip_gen: v5e
topology: v5e:2x2
jax: 0.10.0
libtpu: 0.0.40
codegen_flags: <defaults>
</compile_context>

<pallas_src>
import functools
import math

import jax
import jax.numpy as jnp
from jax.experimental import pallas as pl
from jax.experimental.pallas import tpu as pltpu


# ---------------------------------------------------------------------------
# Fused:  out[s, b, :] = emb_table[tokens[s, b]] * sqrt(E) + pos_table[s, 0, :]
# ---------------------------------------------------------------------------
def _finalize(o_ref, pos_ref, scale):
    # Fused sqrt(emb_size) scale + positional-encoding add.
    # pos_ref block is (block_s, 1, E) and broadcasts over the batch dim.
    x = o_ref[...].astype(jnp.float32) * scale + pos_ref[...].astype(jnp.float32)
    o_ref[...] = x.astype(o_ref.dtype)


def _embed_pos_kernel_hbm(tok_ref, emb_hbm, pos_ref, o_ref, sem,
                          *, scale, block_s, batch):
    """General path: embedding table stays in HBM, per-row DMA gather.

    tok_ref : (seq*batch,) int32   flattened token ids (SMEM, scalar prefetch)
    emb_hbm : (V, E)               embedding table (HBM, pl.ANY)
    pos_ref : (block_s, 1, E)      positional-encoding slice (VMEM)
    o_ref   : (block_s, batch, E)  output block (VMEM) -- rows are DMA'd straight in
    sem     : single DMA semaphore shared by all row copies of this block
    """
    base = pl.program_id(0) * (block_s * batch)
    # Issue every row DMA first (all SMEM id reads happen before any wait);
    # the DMA engine overlaps them.
    for sl in range(block_s):            # static unroll: block_s, batch are small ints
        for b in range(batch):
            row = tok_ref[base + sl * batch + b]
            pltpu.make_async_copy(
                emb_hbm.at[pl.ds(row, 1), :],      # (1, E) table row
                o_ref.at[sl, pl.ds(b, 1), :],      # (1, E) slot in the output block
                sem,
            ).start()
    # Single aggregated wait: DMA semaphores count bytes, so a descriptor covering
    # the whole output block waits for all block_s*batch row copies at once.
    pltpu.make_async_copy(o_ref, o_ref, sem).wait()
    _finalize(o_ref, pos_ref, scale)


def _embed_pos_kernel_vmem(tok_ref, emb_ref, pos_ref, o_ref,
                           *, scale, block_s, batch):
    """Small-table fast path: the whole table is VMEM-resident; rows are fetched
    with dynamic vector loads (no DMA-descriptor/issue overhead)."""
    base = pl.program_id(0) * (block_s * batch)
    for sl in range(block_s):
        for b in range(batch):
            row = tok_ref[base + sl * batch + b]
            o_ref[sl, pl.ds(b, 1), :] = emb_ref[pl.ds(row, 1), :]
    _finalize(o_ref, pos_ref, scale)


def _pick_block_s(seq, batch, target_rows):
    """Rows gathered per grid step = block_s * batch.

    Pick the largest divisor of seq so no padding / post-kernel slice is needed,
    while bounding the statically unrolled gather loop to ~target_rows rows.
    """
    req = max(1, min(target_rows // max(batch, 1), seq))
    for d in range(req, 0, -1):
        if seq % d == 0:
            return d
    return 1  # unreachable (d == 1 always divides), kept for clarity


def token_embedding_with_pos(tokens, emb_table, pos_table, *,
                             target_rows=256,
                             force_hbm_gather=False,
                             vmem_table_limit_bytes=4 * 1024 * 1024):
    """Fused TokenEmbedding + PositionalEncoding forward (dropout = identity, eval).

    tokens    : (seq, batch) integer ids        (torch tokens.long() -> int32 here)
    emb_table : (vocab, emb) embedding weights   (output dtype follows this dtype)
    pos_table : (maxlen, 1, emb) PE buffer       (same layout as the torch module)
    returns   : (seq, batch, emb)
    """
    seq, batch = tokens.shape
    vocab, emb = emb_table.shape
    scale = float(math.sqrt(emb))

    # tokens.long() equivalent; clamp so bad ids can never gather OOB HBM rows
    # (documented divergence: nn.Embedding would error on out-of-range ids).
    flat = jnp.clip(tokens.reshape(-1).astype(jnp.int32), 0, vocab - 1)
    pos = pos_table[:seq].astype(jnp.float32)            # (seq, 1, emb)

    block_s = _pick_block_s(seq, batch, target_rows)
    grid = (seq // block_s,)
    out_dtype = emb_table.dtype

    # Block specs: only the seq axis is tiled; batch & emb stay at full extent, so
    # every VMEM block is lane-dense and the output is written in its native layout.
    pos_spec = pl.BlockSpec((block_s, 1, emb), lambda i, tok: (i, 0, 0))
    out_spec = pl.BlockSpec((block_s, batch, emb), lambda i, tok: (i, 0, 0))

    table_bytes = vocab * emb * jnp.dtype(emb_table.dtype).itemsize
    use_vmem_table = (table_bytes <= vmem_table_limit_bytes) and not force_hbm_gather

    if use_vmem_table:
        kernel = functools.partial(_embed_pos_kernel_vmem,
                                   scale=scale, block_s=block_s, batch=batch)
        table_spec = pl.BlockSpec((vocab, emb), lambda i, tok: (0, 0))  # whole table in VMEM
        scratch = []
    else:
        kernel = functools.partial(_embed_pos_kernel_hbm,
                                   scale=scale, block_s=block_s, batch=batch)
        table_spec = pl.BlockSpec(memory_space=pl.ANY)                  # table stays in HBM
        scratch = [pltpu.SemaphoreType.DMA]                             # one shared DMA sem

    itemsize = jnp.dtype(out_dtype).itemsize
    cost = pl.CostEstimate(
        flops=2 * seq * batch * emb,                                    # scale + pos add
        transcendentals=0,
        bytes_accessed=(2 * seq * batch * emb * itemsize                # rows read + out write
                        + seq * emb * 4                                 # pos slice
                        + seq * batch * 4),                             # token ids
    )

    # NOTE: blocks here are small (<= ~256 rows * emb); if target_rows is raised
    # aggressively with large emb, set pltpu.CompilerParams(vmem_limit_bytes=...)
    # (v5e scoped default 16 MiB, v7x physical VMEM 64 MiB).
    return pl.pallas_call(
        kernel,
        out_shape=jax.ShapeDtypeStruct((seq, batch, emb), out_dtype),
        grid_spec=pltpu.PrefetchScalarGridSpec(
            num_scalar_prefetch=1,             # flattened token ids -> SMEM
            grid=grid,
            in_specs=[table_spec, pos_spec],
            out_specs=out_spec,
            scratch_shapes=scratch,
        ),
        compiler_params=pltpu.CompilerParams(
            dimension_semantics=("parallel",),  # both v7x TensorCores split the seq blocks
        ),
        cost_estimate=cost,
    )(flat, emb_table, pos)


# ---------------------------------------------------------------------------
# PositionalEncoding buffer, identical to the PyTorch module's registered buffer.
# ---------------------------------------------------------------------------
def make_positional_encoding_table(emb_size: int, maxlen: int = 5000):
    den = jnp.exp(
        -jnp.arange(0, emb_size, 2, dtype=jnp.float32) * (math.log(10000.0) / emb_size)
    )
    pos = jnp.arange(0, maxlen, dtype=jnp.float32).reshape(maxlen, 1)
    pe = jnp.zeros((maxlen, emb_size), dtype=jnp.float32)
    pe = pe.at[:, 0::2].set(jnp.sin(pos * den))
    pe = pe.at[:, 1::2].set(jnp.cos(pos * den))
    return pe.reshape(maxlen, 1, emb_size)


if __name__ == "__main__":
    # Small deterministic config consistent with the Seq2SeqTransformer front end.
    vocab_size = 32
    emb_size = 32          # d_model (divisible by NHEAD=8 in the full model)
    seq_len = 8
    batch = 2
    maxlen = 64

    key = jax.random.PRNGKey(0)
    k_emb, k_tok = jax.random.split(key)

    emb_table = jax.random.normal(k_emb, (vocab_size, emb_size), dtype=jnp.float32)  # nn.Embedding ~ N(0,1)
    tokens = jax.random.randint(k_tok, (seq_len, batch), 0, vocab_size, dtype=jnp.int32)
    pos_table = make_positional_encoding_table(emb_size, maxlen=maxlen)

    # src_emb = positional_encoding(src_tok_emb(src))  -- dropout is identity at eval.
    # Exercise BOTH code paths: the VMEM small-table fast path and the general
    # HBM per-row-DMA gather path.
    src_emb_fast = token_embedding_with_pos(tokens, emb_table, pos_table)
    src_emb_hbm = token_embedding_with_pos(tokens, emb_table, pos_table,
                                           force_hbm_gather=True)
    src_emb_fast, src_emb_hbm = jax.block_until_ready((src_emb_fast, src_emb_hbm))

    # Pure-JAX reference.
    ref = emb_table[tokens] * math.sqrt(emb_size) + pos_table[:seq_len]

    assert src_emb_fast.shape == (seq_len, batch, emb_size), src_emb_fast.shape
    assert jnp.allclose(src_emb_fast, ref, atol=1e-5, rtol=1e-5), "vmem-path mismatch"
    assert jnp.allclose(src_emb_hbm, ref, atol=1e-5, rtol=1e-5), "hbm-gather-path mismatch"

    print("KERNEL_OK")
</pallas_src>

<mosaic_0001>
module attributes {stable_mosaic.version = 11 : i64} {
  func.func @_embed_pos_kernel_vmem(%arg0: i32, %arg1: memref<16xi32, #tpu.memory_space<smem>>, %arg2: memref<32x32xf32, #tpu.memory_space<vmem>>, %arg3: memref<8x1x32xf32, #tpu.memory_space<vmem>>, %arg4: memref<8x2x32xf32, #tpu.memory_space<vmem>>) attributes {dimension_semantics = [#tpu.dimension_semantics<parallel>], iteration_bounds = array<i64: 1>, scalar_prefetch = 1 : i64, scratch_operands = 0 : i64, tpu.core_type = #tpu.core_type<tc>, window_params = [{pipeline_mode = #tpu.pipeline_mode<synchronous>, transform_indices = @transform_0, window_bounds = array<i64: 32, 32>}, {transform_indices = @transform_1, window_bounds = array<i64: 8, 1, 32>}, {transform_indices = @transform_2, window_bounds = array<i64: 8, 2, 32>}]} {
    %c16_i32 = arith.constant 16 : i32
    %0 = arith.muli %arg0, %c16_i32 : i32
    %c0_i32 = arith.constant 0 : i32
    %1 = arith.addi %0, %c0_i32 : i32
    %c0_i32_0 = arith.constant 0 : i32
    %2 = arith.addi %1, %c0_i32_0 : i32
    %3 = arith.index_cast %2 : i32 to index
    %4 = memref.load %arg1[%3] : memref<16xi32, #tpu.memory_space<smem>>
    %5 = arith.index_cast %4 : i32 to index
    %c0 = arith.constant 0 : index
    %6 = vector.load %arg2[%5, %c0] : memref<32x32xf32, #tpu.memory_space<vmem>>, vector<1x32xf32>
    %c0_1 = arith.constant 0 : index
    %c0_2 = arith.constant 0 : index
    %c0_3 = arith.constant 0 : index
    %7 = vector.load %arg4[%c0_1, %c0_2, %c0_3] : memref<8x2x32xf32, #tpu.memory_space<vmem>>, vector<1x1x32xf32>
    %8 = vector.shape_cast %7 : vector<1x1x32xf32> to vector<1x32xf32>
    %9 = vector.shape_cast %6 : vector<1x32xf32> to vector<1x1x32xf32>
    tpu.vector_store %arg4[%c0_1, %c0_2, %c0_3], %9 {strides = array<i32>} : memref<8x2x32xf32, #tpu.memory_space<vmem>>, vector<1x1x32xf32>,
    %c0_i32_4 = arith.constant 0 : i32
    %10 = arith.addi %0, %c0_i32_4 : i32
    %c1_i32 = arith.constant 1 : i32
    %11 = arith.addi %10, %c1_i32 : i32
    %12 = arith.index_cast %11 : i32 to index
    %13 = memref.load %arg1[%12] : memref<16xi32, #tpu.memory_space<smem>>
    %14 = arith.index_cast %13 : i32 to index
    %c0_5 = arith.constant 0 : index
    %15 = vector.load %arg2[%14, %c0_5] : memref<32x32xf32, #tpu.memory_space<vmem>>, vector<1x32xf32>
    %c0_6 = arith.constant 0 : index
    %c1 = arith.constant 1 : index
    %c0_7 = arith.constant 0 : index
    %16 = vector.load %arg4[%c0_6, %c1, %c0_7] : memref<8x2x32xf32, #tpu.memory_space<vmem>>, vector<1x1x32xf32>
    %17 = vector.shape_cast %16 : vector<1x1x32xf32> to vector<1x32xf32>
    %18 = vector.shape_cast %15 : vector<1x32xf32> to vector<1x1x32xf32>
    tpu.vector_store %arg4[%c0_6, %c1, %c0_7], %18 {strides = array<i32>} : memref<8x2x32xf32, #tpu.memory_space<vmem>>, vector<1x1x32xf32>,
    %c2_i32 = arith.constant 2 : i32
    %19 = arith.addi %0, %c2_i32 : i32
    %c0_i32_8 = arith.constant 0 : i32
    %20 = arith.addi %19, %c0_i32_8 : i32
    %21 = arith.index_cast %20 : i32 to index
    %22 = memref.load %arg1[%21] : memref<16xi32, #tpu.memory_space<smem>>
    %23 = arith.index_cast %22 : i32 to index
    %c0_9 = arith.constant 0 : index
    %24 = vector.load %arg2[%23, %c0_9] : memref<32x32xf32, #tpu.memory_space<vmem>>, vector<1x32xf32>
    %c1_10 = arith.constant 1 : index
    %c0_11 = arith.constant 0 : index
    %c0_12 = arith.constant 0 : index
    %25 = vector.load %arg4[%c1_10, %c0_11, %c0_12] : memref<8x2x32xf32, #tpu.memory_space<vmem>>, vector<1x1x32xf32>
    %26 = vector.shape_cast %25 : vector<1x1x32xf32> to vector<1x32xf32>
    %27 = vector.shape_cast %24 : vector<1x32xf32> to vector<1x1x32xf32>
    tpu.vector_store %arg4[%c1_10, %c0_11, %c0_12], %27 {strides = array<i32>} : memref<8x2x32xf32, #tpu.memory_space<vmem>>, vector<1x1x32xf32>,
    %c2_i32_13 = arith.constant 2 : i32
    %28 = arith.addi %0, %c2_i32_13 : i32
    %c1_i32_14 = arith.constant 1 : i32
    %29 = arith.addi %28, %c1_i32_14 : i32
    %30 = arith.index_cast %29 : i32 to index
    %31 = memref.load %arg1[%30] : memref<16xi32, #tpu.memory_space<smem>>
    %32 = arith.index_cast %31 : i32 to index
    %c0_15 = arith.constant 0 : index
    %33 = vector.load %arg2[%32, %c0_15] : memref<32x32xf32, #tpu.memory_space<vmem>>, vector<1x32xf32>
    %c1_16 = arith.constant 1 : index
    %c1_17 = arith.constant 1 : index
    %c0_18 = arith.constant 0 : index
    %34 = vector.load %arg4[%c1_16, %c1_17, %c0_18] : memref<8x2x32xf32, #tpu.memory_space<vmem>>, vector<1x1x32xf32>
    %35 = vector.shape_cast %34 : vector<1x1x32xf32> to vector<1x32xf32>
    %36 = vector.shape_cast %33 : vector<1x32xf32> to vector<1x1x32xf32>
    tpu.vector_store %arg4[%c1_16, %c1_17, %c0_18], %36 {strides = array<i32>} : memref<8x2x32xf32, #tpu.memory_space<vmem>>, vector<1x1x32xf32>,
    %c4_i32 = arith.constant 4 : i32
    %37 = arith.addi %0, %c4_i32 : i32
    %c0_i32_19 = arith.constant 0 : i32
    %38 = arith.addi %37, %c0_i32_19 : i32
    %39 = arith.index_cast %38 : i32 to index
    %40 = memref.load %arg1[%39] : memref<16xi32, #tpu.memory_space<smem>>
    %41 = arith.index_cast %40 : i32 to index
    %c0_20 = arith.constant 0 : index
    %42 = vector.load %arg2[%41, %c0_20] : memref<32x32xf32, #tpu.memory_space<vmem>>, vector<1x32xf32>
    %c2 = arith.constant 2 : index
    %c0_21 = arith.constant 0 : index
    %c0_22 = arith.constant 0 : index
    %43 = vector.load %arg4[%c2, %c0_21, %c0_22] : memref<8x2x32xf32, #tpu.memory_space<vmem>>, vector<1x1x32xf32>
    %44 = vector.shape_cast %43 : vector<1x1x32xf32> to vector<1x32xf32>
    %45 = vector.shape_cast %42 : vector<1x32xf32> to vector<1x1x32xf32>
    tpu.vector_store %arg4[%c2, %c0_21, %c0_22], %45 {strides = array<i32>} : memref<8x2x32xf32, #tpu.memory_space<vmem>>, vector<1x1x32xf32>,
    %c4_i32_23 = arith.constant 4 : i32
    %46 = arith.addi %0, %c4_i32_23 : i32
    %c1_i32_24 = arith.constant 1 : i32
    %47 = arith.addi %46, %c1_i32_24 : i32
    %48 = arith.index_cast %47 : i32 to index
    %49 = memref.load %arg1[%48] : memref<16xi32, #tpu.memory_space<smem>>
    %50 = arith.index_cast %49 : i32 to index
    %c0_25 = arith.constant 0 : index
    %51 = vector.load %arg2[%50, %c0_25] : memref<32x32xf32, #tpu.memory_space<vmem>>, vector<1x32xf32>
    %c2_26 = arith.constant 2 : index
    %c1_27 = arith.constant 1 : index
    %c0_28 = arith.constant 0 : index
    %52 = vector.load %arg4[%c2_26, %c1_27, %c0_28] : memref<8x2x32xf32, #tpu.memory_space<vmem>>, vector<1x1x32xf32>
    %53 = vector.shape_cast %52 : vector<1x1x32xf32> to vector<1x32xf32>
    %54 = vector.shape_cast %51 : vector<1x32xf32> to vector<1x1x32xf32>
    tpu.vector_store %arg4[%c2_26, %c1_27, %c0_28], %54 {strides = array<i32>} : memref<8x2x32xf32, #tpu.memory_space<vmem>>, vector<1x1x32xf32>,
    %c6_i32 = arith.constant 6 : i32
    %55 = arith.addi %0, %c6_i32 : i32
    %c0_i32_29 = arith.constant 0 : i32
    %56 = arith.addi %55, %c0_i32_29 : i32
    %57 = arith.index_cast %56 : i32 to index
    %58 = memref.load %arg1[%57] : memref<16xi32, #tpu.memory_space<smem>>
    %59 = arith.index_cast %58 : i32 to index
    %c0_30 = arith.constant 0 : index
    %60 = vector.load %arg2[%59, %c0_30] : memref<32x32xf32, #tpu.memory_space<vmem>>, vector<1x32xf32>
    %c3 = arith.constant 3 : index
    %c0_31 = arith.constant 0 : index
    %c0_32 = arith.constant 0 : index
    %61 = vector.load %arg4[%c3, %c0_31, %c0_32] : memref<8x2x32xf32, #tpu.memory_space<vmem>>, vector<1x1x32xf32>
    %62 = vector.shape_cast %61 : vector<1x1x32xf32> to vector<1x32xf32>
    %63 = vector.shape_cast %60 : vector<1x32xf32> to vector<1x1x32xf32>
    tpu.vector_store %arg4[%c3, %c0_31, %c0_32], %63 {strides = array<i32>} : memref<8x2x32xf32, #tpu.memory_space<vmem>>, vector<1x1x32xf32>,
    %c6_i32_33 = arith.constant 6 : i32
    %64 = arith.addi %0, %c6_i32_33 : i32
    %c1_i32_34 = arith.constant 1 : i32
    %65 = arith.addi %64, %c1_i32_34 : i32
    %66 = arith.index_cast %65 : i32 to index
    %67 = memref.load %arg1[%66] : memref<16xi32, #tpu.memory_space<smem>>
    %68 = arith.index_cast %67 : i32 to index
    %c0_35 = arith.constant 0 : index
    %69 = vector.load %arg2[%68, %c0_35] : memref<32x32xf32, #tpu.memory_space<vmem>>, vector<1x32xf32>
    %c3_36 = arith.constant 3 : index
    %c1_37 = arith.constant 1 : index
    %c0_38 = arith.constant 0 : index
    %70 = vector.load %arg4[%c3_36, %c1_37, %c0_38] : memref<8x2x32xf32, #tpu.memory_space<vmem>>, vector<1x1x32xf32>
    %71 = vector.shape_cast %70 : vector<1x1x32xf32> to vector<1x32xf32>
    %72 = vector.shape_cast %69 : vector<1x32xf32> to vector<1x1x32xf32>
    tpu.vector_store %arg4[%c3_36, %c1_37, %c0_38], %72 {strides = array<i32>} : memref<8x2x32xf32, #tpu.memory_space<vmem>>, vector<1x1x32xf32>,
    %c8_i32 = arith.constant 8 : i32
    %73 = arith.addi %0, %c8_i32 : i32
    %c0_i32_39 = arith.constant 0 : i32
    %74 = arith.addi %73, %c0_i32_39 : i32
    %75 = arith.index_cast %74 : i32 to index
    %76 = memref.load %arg1[%75] : memref<16xi32, #tpu.memory_space<smem>>
    %77 = arith.index_cast %76 : i32 to index
    %c0_40 = arith.constant 0 : index
    %78 = vector.load %arg2[%77, %c0_40] : memref<32x32xf32, #tpu.memory_space<vmem>>, vector<1x32xf32>
    %c4 = arith.constant 4 : index
    %c0_41 = arith.constant 0 : index
    %c0_42 = arith.constant 0 : index
    %79 = vector.load %arg4[%c4, %c0_41, %c0_42] : memref<8x2x32xf32, #tpu.memory_space<vmem>>, vector<1x1x32xf32>
    %80 = vector.shape_cast %79 : vector<1x1x32xf32> to vector<1x32xf32>
    %81 = vector.shape_cast %78 : vector<1x32xf32> to vector<1x1x32xf32>
    tpu.vector_store %arg4[%c4, %c0_41, %c0_42], %81 {strides = array<i32>} : memref<8x2x32xf32, #tpu.memory_space<vmem>>, vector<1x1x32xf32>,
    %c8_i32_43 = arith.constant 8 : i32
    %82 = arith.addi %0, %c8_i32_43 : i32
    %c1_i32_44 = arith.constant 1 : i32
    %83 = arith.addi %82, %c1_i32_44 : i32
    %84 = arith.index_cast %83 : i32 to index
    %85 = memref.load %arg1[%84] : memref<16xi32, #tpu.memory_space<smem>>
    %86 = arith.index_cast %85 : i32 to index
    %c0_45 = arith.constant 0 : index
    %87 = vector.load %arg2[%86, %c0_45] : memref<32x32xf32, #tpu.memory_space<vmem>>, vector<1x32xf32>
    %c4_46 = arith.constant 4 : index
    %c1_47 = arith.constant 1 : index
    %c0_48 = arith.constant 0 : index
    %88 = vector.load %arg4[%c4_46, %c1_47, %c0_48] : memref<8x2x32xf32, #tpu.memory_space<vmem>>, vector<1x1x32xf32>
    %89 = vector.shape_cast %88 : vector<1x1x32xf32> to vector<1x32xf32>
    %90 = vector.shape_cast %87 : vector<1x32xf32> to vector<1x1x32xf32>
    tpu.vector_store %arg4[%c4_46, %c1_47, %c0_48], %90 {strides = array<i32>} : memref<8x2x32xf32, #tpu.memory_space<vmem>>, vector<1x1x32xf32>,
    %c10_i32 = arith.constant 10 : i32
    %91 = arith.addi %0, %c10_i32 : i32
    %c0_i32_49 = arith.constant 0 : i32
    %92 = arith.addi %91, %c0_i32_49 : i32
    %93 = arith.index_cast %92 : i32 to index
    %94 = memref.load %arg1[%93] : memref<16xi32, #tpu.memory_space<smem>>
    %95 = arith.index_cast %94 : i32 to index
    %c0_50 = arith.constant 0 : index
    %96 = vector.load %arg2[%95, %c0_50] : memref<32x32xf32, #tpu.memory_space<vmem>>, vector<1x32xf32>
    %c5 = arith.constant 5 : index
    %c0_51 = arith.constant 0 : index
    %c0_52 = arith.constant 0 : index
    %97 = vector.load %arg4[%c5, %c0_51, %c0_52] : memref<8x2x32xf32, #tpu.memory_space<vmem>>, vector<1x1x32xf32>
    %98 = vector.shape_cast %97 : vector<1x1x32xf32> to vector<1x32xf32>
    %99 = vector.shape_cast %96 : vector<1x32xf32> to vector<1x1x32xf32>
    tpu.vector_store %arg4[%c5, %c0_51, %c0_52], %99 {strides = array<i32>} : memref<8x2x32xf32, #tpu.memory_space<vmem>>, vector<1x1x32xf32>,
    %c10_i32_53 = arith.constant 10 : i32
    %100 = arith.addi %0, %c10_i32_53 : i32
    %c1_i32_54 = arith.constant 1 : i32
    %101 = arith.addi %100, %c1_i32_54 : i32
    %102 = arith.index_cast %101 : i32 to index
    %103 = memref.load %arg1[%102] : memref<16xi32, #tpu.memory_space<smem>>
    %104 = arith.index_cast %103 : i32 to index
    %c0_55 = arith.constant 0 : index
    %105 = vector.load %arg2[%104, %c0_55] : memref<32x32xf32, #tpu.memory_space<vmem>>, vector<1x32xf32>
    %c5_56 = arith.constant 5 : index
    %c1_57 = arith.constant 1 : index
    %c0_58 = arith.constant 0 : index
    %106 = vector.load %arg4[%c5_56, %c1_57, %c0_58] : memref<8x2x32xf32, #tpu.memory_space<vmem>>, vector<1x1x32xf32>
    %107 = vector.shape_cast %106 : vector<1x1x32xf32> to vector<1x32xf32>
    %108 = vector.shape_cast %105 : vector<1x32xf32> to vector<1x1x32xf32>
    tpu.vector_store %arg4[%c5_56, %c1_57, %c0_58], %108 {strides = array<i32>} : memref<8x2x32xf32, #tpu.memory_space<vmem>>, vector<1x1x32xf32>,
    %c12_i32 = arith.constant 12 : i32
    %109 = arith.addi %0, %c12_i32 : i32
    %c0_i32_59 = arith.constant 0 : i32
    %110 = arith.addi %109, %c0_i32_59 : i32
    %111 = arith.index_cast %110 : i32 to index
    %112 = memref.load %arg1[%111] : memref<16xi32, #tpu.memory_space<smem>>
    %113 = arith.index_cast %112 : i32 to index
    %c0_60 = arith.constant 0 : index
    %114 = vector.load %arg2[%113, %c0_60] : memref<32x32xf32, #tpu.memory_space<vmem>>, vector<1x32xf32>
    %c6 = arith.constant 6 : index
    %c0_61 = arith.constant 0 : index
    %c0_62 = arith.constant 0 : index
    %115 = vector.load %arg4[%c6, %c0_61, %c0_62] : memref<8x2x32xf32, #tpu.memory_space<vmem>>, vector<1x1x32xf32>
    %116 = vector.shape_cast %115 : vector<1x1x32xf32> to vector<1x32xf32>
    %117 = vector.shape_cast %114 : vector<1x32xf32> to vector<1x1x32xf32>
    tpu.vector_store %arg4[%c6, %c0_61, %c0_62], %117 {strides = array<i32>} : memref<8x2x32xf32, #tpu.memory_space<vmem>>, vector<1x1x32xf32>,
    %c12_i32_63 = arith.constant 12 : i32
    %118 = arith.addi %0, %c12_i32_63 : i32
    %c1_i32_64 = arith.constant 1 : i32
    %119 = arith.addi %118, %c1_i32_64 : i32
    %120 = arith.index_cast %119 : i32 to index
    %121 = memref.load %arg1[%120] : memref<16xi32, #tpu.memory_space<smem>>
    %122 = arith.index_cast %121 : i32 to index
    %c0_65 = arith.constant 0 : index
    %123 = vector.load %arg2[%122, %c0_65] : memref<32x32xf32, #tpu.memory_space<vmem>>, vector<1x32xf32>
    %c6_66 = arith.constant 6 : index
    %c1_67 = arith.constant 1 : index
    %c0_68 = arith.constant 0 : index
    %124 = vector.load %arg4[%c6_66, %c1_67, %c0_68] : memref<8x2x32xf32, #tpu.memory_space<vmem>>, vector<1x1x32xf32>
    %125 = vector.shape_cast %124 : vector<1x1x32xf32> to vector<1x32xf32>
    %126 = vector.shape_cast %123 : vector<1x32xf32> to vector<1x1x32xf32>
    tpu.vector_store %arg4[%c6_66, %c1_67, %c0_68], %126 {strides = array<i32>} : memref<8x2x32xf32, #tpu.memory_space<vmem>>, vector<1x1x32xf32>,
    %c14_i32 = arith.constant 14 : i32
    %127 = arith.addi %0, %c14_i32 : i32
    %c0_i32_69 = arith.constant 0 : i32
    %128 = arith.addi %127, %c0_i32_69 : i32
    %129 = arith.index_cast %128 : i32 to index
    %130 = memref.load %arg1[%129] : memref<16xi32, #tpu.memory_space<smem>>
    %131 = arith.index_cast %130 : i32 to index
    %c0_70 = arith.constant 0 : index
    %132 = vector.load %arg2[%131, %c0_70] : memref<32x32xf32, #tpu.memory_space<vmem>>, vector<1x32xf32>
    %c7 = arith.constant 7 : index
    %c0_71 = arith.constant 0 : index
    %c0_72 = arith.constant 0 : index
    %133 = vector.load %arg4[%c7, %c0_71, %c0_72] : memref<8x2x32xf32, #tpu.memory_space<vmem>>, vector<1x1x32xf32>
    %134 = vector.shape_cast %133 : vector<1x1x32xf32> to vector<1x32xf32>
    %135 = vector.shape_cast %132 : vector<1x32xf32> to vector<1x1x32xf32>
    tpu.vector_store %arg4[%c7, %c0_71, %c0_72], %135 {strides = array<i32>} : memref<8x2x32xf32, #tpu.memory_space<vmem>>, vector<1x1x32xf32>,
    %c14_i32_73 = arith.constant 14 : i32
    %136 = arith.addi %0, %c14_i32_73 : i32
    %c1_i32_74 = arith.constant 1 : i32
    %137 = arith.addi %136, %c1_i32_74 : i32
    %138 = arith.index_cast %137 : i32 to index
    %139 = memref.load %arg1[%138] : memref<16xi32, #tpu.memory_space<smem>>
    %140 = arith.index_cast %139 : i32 to index
    %c0_75 = arith.constant 0 : index
    %141 = vector.load %arg2[%140, %c0_75] : memref<32x32xf32, #tpu.memory_space<vmem>>, vector<1x32xf32>
    %c7_76 = arith.constant 7 : index
    %c1_77 = arith.constant 1 : index
    %c0_78 = arith.constant 0 : index
    %142 = vector.load %arg4[%c7_76, %c1_77, %c0_78] : memref<8x2x32xf32, #tpu.memory_space<vmem>>, vector<1x1x32xf32>
    %143 = vector.shape_cast %142 : vector<1x1x32xf32> to vector<1x32xf32>
    %144 = vector.shape_cast %141 : vector<1x32xf32> to vector<1x1x32xf32>
    tpu.vector_store %arg4[%c7_76, %c1_77, %c0_78], %144 {strides = array<i32>} : memref<8x2x32xf32, #tpu.memory_space<vmem>>, vector<1x1x32xf32>,
    %c0_79 = arith.constant 0 : index
    %c0_80 = arith.constant 0 : index
    %c0_81 = arith.constant 0 : index
    %145 = vector.load %arg4[%c0_79, %c0_80, %c0_81] : memref<8x2x32xf32, #tpu.memory_space<vmem>>, vector<8x2x32xf32>
    %cst = arith.constant 5.65685415 : f32
    %146 = vector.broadcast %cst : f32 to vector<8x2x32xf32>
    %147 = arith.mulf %145, %146 : vector<8x2x32xf32>
    %c0_82 = arith.constant 0 : index
    %c0_83 = arith.constant 0 : index
    %c0_84 = arith.constant 0 : index
    %148 = vector.load %arg3[%c0_82, %c0_83, %c0_84] : memref<8x1x32xf32, #tpu.memory_space<vmem>>, vector<8x1x32xf32>
    %149 = vector.broadcast %148 : vector<8x1x32xf32> to vector<8x2x32xf32>
    %150 = arith.addf %147, %149 : vector<8x2x32xf32>
    %c0_85 = arith.constant 0 : index
    %c0_86 = arith.constant 0 : index
    %c0_87 = arith.constant 0 : index
    %151 = vector.load %arg4[%c0_85, %c0_86, %c0_87] : memref<8x2x32xf32, #tpu.memory_space<vmem>>, vector<8x2x32xf32>
    tpu.vector_store %arg4[%c0_85, %c0_86, %c0_87], %150 {strides = array<i32>} : memref<8x2x32xf32, #tpu.memory_space<vmem>>, vector<8x2x32xf32>,
    return
  }
  func.func @transform_0(%arg0: i32, %arg1: memref<16xi32, #tpu.memory_space<smem>>) -> (i32, i32) {
    %c0_i32 = arith.constant 0 : i32
    %c0_i32_0 = arith.constant 0 : i32
    %c0_i32_1 = arith.constant 0 : i32
    return %c0_i32, %c0_i32_0 : i32, i32
  }
  func.func @transform_1(%arg0: i32, %arg1: memref<16xi32, #tpu.memory_space<smem>>) -> (i32, i32, i32) {
    %c0_i32 = arith.constant 0 : i32
    %c0_i32_0 = arith.constant 0 : i32
    %c0_i32_1 = arith.constant 0 : i32
    return %arg0, %c0_i32, %c0_i32_0 : i32, i32, i32
  }
  func.func @transform_2(%arg0: i32, %arg1: memref<16xi32, #tpu.memory_space<smem>>) -> (i32, i32, i32) {
    %c0_i32 = arith.constant 0 : i32
    %c0_i32_0 = arith.constant 0 : i32
    %c0_i32_1 = arith.constant 0 : i32
    return %arg0, %c0_i32, %c0_i32_0 : i32, i32, i32
  }
}

</mosaic_0001>

<llo_original>
// kernel: tpu_custom_call.1
$region0: #{tpu_custom_call.1}
  #allocation0 [shape = 'u32[]', space=smem, size = 0x4, offset = 0x4, fixed_abs, tag = 'smem constant byte address 0x4 - core index']
  #allocation1 [shape = 'u32[72,128]{1,0:T(1,128)}', space=vmem, size = 0x9000, scoped, tag = 'internal scratch']
  #allocation2 [shape = 's32[1]{0}', space=sflag, size = 0x4, scoped, tag = 'scoped memory for tpu_custom_call.1']
  #allocation3 [shape = 'u8[512]{0}', space=smem, size = 0x200, scoped, tag = 'prefetched SMEM operand 0']
  %s0 = inlined_call_operand.hbm [shape: s32[16], index: 0, kind: input, shape index: {}]
  %s1 = inlined_call_operand.hbm [shape: f32[32,32], index: 1, kind: input, shape index: {}]
  %s2 = inlined_call_operand.hbm [shape: f32[8,1,32], index: 2, kind: input, shape index: {}]
  %s3 = inlined_call_operand.hbm [shape: f32[8,2,32], index: 3, kind: output, shape index: {}]
  %s4 = sld [smem:[#allocation0]]
  $region26: #{tpu_custom_call.1} parent=0
    _
  %s6 = ssub.s32 1, %s4
  %s7 = scalar_select 0, %s6, %s4
  %s9 = sshll.u32 %s0, 4
  %s10 = int_to_ptr.hbm [resolvable:$true] %s9
  %12 = dma.hbm_to_smem %s10, 16, [#allocation3], [#allocation2]
  %14 = dma.done [#allocation2], 16
  %15 = sfence
  $region1: #{tpu_custom_call.1} parent=0
    #allocation4 [shape = 'u8[16384]{0}', space=vmem, size = 0x4000, scoped, tag = 'input window, operand 1, single buffered']
    #allocation5 [shape = 's32[1]{0}', space=sflag, size = 0x4, scoped, tag = 'scoped memory for tpu_custom_call.1']
    #allocation6 [shape = 's32[1]{0}', space=sflag, size = 0x4, scoped, tag = 'scoped memory for tpu_custom_call.1']
    #allocation7 [shape = 'u8[4096]{0}', space=vmem, size = 0x1000, scoped, tag = 'input window, operand 2, single buffered']
    #allocation8 [shape = 's32[1]{0}', space=sflag, size = 0x4, scoped, tag = 'scoped memory for tpu_custom_call.1']
    #allocation9 [shape = 'u8[8192]{0}', space=vmem, size = 0x2000, scoped, tag = 'output window, operand 0, single buffered']
    %16 = vsyncpa [#allocation5], 0
    %17 = vsyncpa [#allocation8], 0
    %18 = vsyncpa [#allocation6], 0
    // Predicated region
    $region2: #{tpu_custom_call.1} parent=1 // pred_check
      _
    $region3: #{tpu_custom_call.1} parent=1 // pred_check_branch
      %20 = sbr.rel (0) target = $region5
    $region4: #{tpu_custom_call.1} parent=1 // pred_region
      %22 = vsyncadd [#allocation5], 0
      %s23 = sshll.u32 %s1, 4
      %s24 = int_to_ptr.hbm [resolvable:$true] %s23
      %s25 = sshll.u32 [#allocation4], 4
      %s26 = int_to_ptr.vmem [resolvable:$true] %s25
      %31 = dma.hbm_to_vmem [thread:$0]  %s24, 512, %s26, [#allocation5], 128, 128, 8
    $region5: #{tpu_custom_call.1} parent=1 // pred_fallthru
      _
    // Predicated region
    $region6: #{tpu_custom_call.1} parent=1 // pred_check
      _
    $region7: #{tpu_custom_call.1} parent=1 // pred_check_branch
      %33 = sbr.rel (0) target = $region9
    $region8: #{tpu_custom_call.1} parent=1 // pred_region
      %35 = vsyncadd [#allocation8], 0
      %s36 = sshll.u32 %s2, 4
      %s37 = int_to_ptr.hbm [resolvable:$true] %s36
      %s38 = sshll.u32 [#allocation7], 4
      %s39 = int_to_ptr.vmem [resolvable:$true] %s38
      %44 = dma.hbm_to_vmem [thread:$0]  %s37, 128, %s39, [#allocation8], 16, 16, 1
    $region9: #{tpu_custom_call.1} parent=1 // pred_fallthru
      _
    // Predicated region
    $region10: #{tpu_custom_call.1} parent=1 // pred_check
      _
    $region11: #{tpu_custom_call.1} parent=1 // pred_check_branch
      %46 = sbr.rel (0) target = $region13
    $region12: #{tpu_custom_call.1} parent=1 // pred_region
      %48 = dma.done [#allocation5], 512
    $region13: #{tpu_custom_call.1} parent=1 // pred_fallthru
      _
    // Predicated region
    $region14: #{tpu_custom_call.1} parent=1 // pred_check
      _
    $region15: #{tpu_custom_call.1} parent=1 // pred_check_branch
      %50 = sbr.rel (0) target = $region17
    $region16: #{tpu_custom_call.1} parent=1 // pred_region
      %52 = dma.done [#allocation8], 128
    $region17: #{tpu_custom_call.1} parent=1 // pred_fallthru
      _
    %s53 = smul.u32 0, 16
    %s54 = sld [smem:[#allocation3 + %s53]]
    %s55 = scalar_lea.vmem [#allocation4], %s54
    %v56 = vld [vmem:[%s55] sm:$0x1]
    %vm57 = vcmask 253952
    %58 = vst.msk [vmem:[#allocation9] sm:$0x1] %vm57, %v56
    %s59 = sadd.s32 %s53, 1
    %s60 = sld [smem:[#allocation3 + %s59]]
    %s61 = scalar_lea.vmem [#allocation4], %s60
    %v62 = vld [vmem:[%s61] sm:$0x1]
    %63 = vst.msk [vmem:[#allocation9 + $0x1] sm:$0x1] %vm57, %v62
    %s64 = sadd.s32 %s53, 2
    %s65 = sld [smem:[#allocation3 + %s64]]
    %s66 = scalar_lea.vmem [#allocation4], %s65
    %v67 = vld [vmem:[%s66] sm:$0x1]
    %s68 = scalar_lea.vmem [#allocation9], 2
    %69 = vst.msk [vmem:[%s68] sm:$0x1] %vm57, %v67
    %s70 = sadd.s32 %s53, 3
    %s71 = sld [smem:[#allocation3 + %s70]]
    %s72 = scalar_lea.vmem [#allocation4], %s71
    %v73 = vld [vmem:[%s72] sm:$0x1]
    %74 = vst.msk [vmem:[%s68 + $0x1] sm:$0x1] %vm57, %v73
    %s75 = sadd.s32 %s53, 4
    %s76 = sld [smem:[#allocation3 + %s75]]
    %s77 = scalar_lea.vmem [#allocation4], %s76
    %v78 = vld [vmem:[%s77] sm:$0x1]
    %s79 = scalar_lea.vmem [#allocation9], 4
    %80 = vst.msk [vmem:[%s79] sm:$0x1] %vm57, %v78
    %s81 = sadd.s32 %s53, 5
    %s82 = sld [smem:[#allocation3 + %s81]]
    %s83 = scalar_lea.vmem [#allocation4], %s82
    %v84 = vld [vmem:[%s83] sm:$0x1]
    %85 = vst.msk [vmem:[%s79 + $0x1] sm:$0x1] %vm57, %v84
    %s86 = sadd.s32 %s53, 6
    %s87 = sld [smem:[#allocation3 + %s86]]
    %s88 = scalar_lea.vmem [#allocation4], %s87
    %v89 = vld [vmem:[%s88] sm:$0x1]
    %s90 = scalar_lea.vmem [#allocation9], 6
    %91 = vst.msk [vmem:[%s90] sm:$0x1] %vm57, %v89
    %s92 = sadd.s32 %s53, 7
    %s93 = sld [smem:[#allocation3 + %s92]]
    %s94 = scalar_lea.vmem [#allocation4], %s93
    %v95 = vld [vmem:[%s94] sm:$0x1]
    %96 = vst.msk [vmem:[%s90 + $0x1] sm:$0x1] %vm57, %v95
    %s97 = sadd.s32 %s53, 8
    %s98 = sld [smem:[#allocation3 + %s97]]
    %s99 = scalar_lea.vmem [#allocation4], %s98
    %v100 = vld [vmem:[%s99] sm:$0x1]
    %s101 = scalar_lea.vmem [#allocation9], 8
    %102 = vst.msk [vmem:[%s101] sm:$0x1] %vm57, %v100
    %s103 = sadd.s32 %s53, 9
    %s104 = sld [smem:[#allocation3 + %s103]]
    %s105 = scalar_lea.vmem [#allocation4], %s104
    %v106 = vld [vmem:[%s105] sm:$0x1]
    %107 = vst.msk [vmem:[%s101 + $0x1] sm:$0x1] %vm57, %v106
    %s108 = sadd.s32 %s53, 10
    %s109 = sld [smem:[#allocation3 + %s108]]
    %s110 = scalar_lea.vmem [#allocation4], %s109
    %v111 = vld [vmem:[%s110] sm:$0x1]
    %s112 = scalar_lea.vmem [#allocation9], 10
    %113 = vst.msk [vmem:[%s112] sm:$0x1] %vm57, %v111
    %s114 = sadd.s32 %s53, 11
    %s115 = sld [smem:[#allocation3 + %s114]]
    %s116 = scalar_lea.vmem [#allocation4], %s115
    %v117 = vld [vmem:[%s116] sm:$0x1]
    %118 = vst.msk [vmem:[%s112 + $0x1] sm:$0x1] %vm57, %v117
    %s119 = sadd.s32 %s53, 12
    %s120 = sld [smem:[#allocation3 + %s119]]
    %s121 = scalar_lea.vmem [#allocation4], %s120
    %v122 = vld [vmem:[%s121] sm:$0x1]
    %s123 = scalar_lea.vmem [#allocation9], 12
    %124 = vst.msk [vmem:[%s123] sm:$0x1] %vm57, %v122
    %s125 = sadd.s32 %s53, 13
    %s126 = sld [smem:[#allocation3 + %s125]]
    %s127 = scalar_lea.vmem [#allocation4], %s126
    %v128 = vld [vmem:[%s127] sm:$0x1]
    %129 = vst.msk [vmem:[%s123 + $0x1] sm:$0x1] %vm57, %v128
    %s130 = sadd.s32 %s53, 14
    %s131 = sld [smem:[#allocation3 + %s130]]
    %s132 = scalar_lea.vmem [#allocation4], %s131
    %v133 = vld [vmem:[%s132] sm:$0x1]
    %s134 = scalar_lea.vmem [#allocation9], 14
    %135 = vst.msk [vmem:[%s134] sm:$0x1] %vm57, %v133
    %s136 = sadd.s32 %s53, 15
    %s137 = sld [smem:[#allocation3 + %s136]]
    %s138 = scalar_lea.vmem [#allocation4], %s137
    %v139 = vld [vmem:[%s138] sm:$0x1]
    %140 = vst.msk [vmem:[%s134 + $0x1] sm:$0x1] %vm57, %v139
    %v141 = vld [vmem:[#allocation9] sm:$0x3]
    %v142 = vld [vmem:[#allocation9 + $0x2] sm:$0x3]
    %v143 = vld [vmem:[#allocation9 + $0x4] sm:$0x3]
    %v144 = vld [vmem:[#allocation9 + $0x6] sm:$0x3]
    %v145 = vld [vmem:[#allocation9 + $0x8] sm:$0x3]
    %v146 = vld [vmem:[#allocation9 + $0xa] sm:$0x3]
    %v147 = vld [vmem:[#allocation9 + $0xc] sm:$0x3]
    %v148 = vld [vmem:[#allocation9 + $0xe] sm:$0x3]
    %v149 = vmul.f32 %v141, 5.656854
    %v150 = vmul.f32 %v142, 5.656854
    %v151 = vmul.f32 %v143, 5.656854
    %v152 = vmul.f32 %v144, 5.656854
    %v153 = vmul.f32 %v145, 5.656854
    %v154 = vmul.f32 %v146, 5.656854
    %v155 = vmul.f32 %v147, 5.656854
    %v156 = vmul.f32 %v148, 5.656854
    %v157 = vld [vmem:[#allocation7] sm:$0x1]
    %v158 = vld [vmem:[#allocation7 + $0x1] sm:$0x1]
    %v159 = vld [vmem:[#allocation7 + $0x2] sm:$0x1]
    %v160 = vld [vmem:[#allocation7 + $0x3] sm:$0x1]
    %v161 = vld [vmem:[#allocation7 + $0x4] sm:$0x1]
    %v162 = vld [vmem:[#allocation7 + $0x5] sm:$0x1]
    %v163 = vld [vmem:[#allocation7 + $0x6] sm:$0x1]
    %v164 = vld [vmem:[#allocation7 + $0x7] sm:$0x1]
    %v173 = vperm.slane %v157, 0
    %v174 = vperm.slane %v158, 0
    %v175 = vperm.slane %v159, 0
    %v176 = vperm.slane %v160, 0
    %v177 = vperm.slane %v161, 0
    %v178 = vperm.slane %v162, 0
    %v179 = vperm.slane %v163, 0
    %v180 = vperm.slane %v164, 0
    %v189 = vadd.f32 %v149, %v173
    %v190 = vadd.f32 %v150, %v174
    %v191 = vadd.f32 %v151, %v175
    %v192 = vadd.f32 %v152, %v176
    %v193 = vadd.f32 %v153, %v177
    %v194 = vadd.f32 %v154, %v178
    %v195 = vadd.f32 %v155, %v179
    %v196 = vadd.f32 %v156, %v180
    %vm197 = vcmask 254976
    %198 = vst.msk [vmem:[#allocation9] sm:$0x3] %vm197, %v189
    %199 = vst.msk [vmem:[#allocation9 + $0x2] sm:$0x3] %vm197, %v190
    %200 = vst.msk [vmem:[#allocation9 + $0x4] sm:$0x3] %vm197, %v191
    %201 = vst.msk [vmem:[#allocation9 + $0x6] sm:$0x3] %vm197, %v192
    %202 = vst.msk [vmem:[#allocation9 + $0x8] sm:$0x3] %vm197, %v193
    %203 = vst.msk [vmem:[#allocation9 + $0xa] sm:$0x3] %vm197, %v194
    %204 = vst.msk [vmem:[#allocation9 + $0xc] sm:$0x3] %vm197, %v195
    %205 = vst.msk [vmem:[#allocation9 + $0xe] sm:$0x3] %vm197, %v196
    // Predicated region
    $region18: #{tpu_custom_call.1} parent=1 // pred_check
      _
    $region19: #{tpu_custom_call.1} parent=1 // pred_check_branch
      %207 = sbr.rel (0) target = $region21
    $region20: #{tpu_custom_call.1} parent=1 // pred_region
      %209 = vsyncadd [#allocation6], 0
      %s210 = sshll.u32 [#allocation9], 4
      %s211 = int_to_ptr.vmem [resolvable:$true] %s210
      %s212 = sshll.u32 %s3, 4
      %s213 = int_to_ptr.hbm [resolvable:$true] %s212
      %218 = dma.vmem_to_hbm [thread:$0]  %s211, 256, %s213, [#allocation6], 32, 32, 2
    $region21: #{tpu_custom_call.1} parent=1 // pred_fallthru
      _
    // Predicated region
    $region22: #{tpu_custom_call.1} parent=1 // pred_check
      _
    $region23: #{tpu_custom_call.1} parent=1 // pred_check_branch
      %220 = sbr.rel (0) target = $region25
    $region24: #{tpu_custom_call.1} parent=1 // pred_region
      %222 = dma.done [#allocation6], 256
    $region25: #{tpu_custom_call.1} parent=1 // pred_fallthru
      _
    %223 = vsyncpa [#allocation5], 1
    %224 = vsyncpa [#allocation8], 1
    %225 = vsyncpa [#allocation6], 1

</llo_original>
